<compile_context>
chip_gen: v7x
topology: tpu7x:2x2x1
jax: 0.10.0
libtpu: 0.0.40
codegen_flags: <defaults>
</compile_context>

<pallas_src>
import functools

import jax
import jax.numpy as jnp
from jax.experimental import pallas as pl
from jax.experimental.pallas import tpu as pltpu

LEAK = 0.01


def _leaky(v):
    return jnp.where(v > 0, v, LEAK * v)


def _round_up(n, m):
    return ((n + m - 1) // m) * m


def disc_kernel(x_ref, w1_ref, b1_ref, w2_ref, b2_ref, w3_ref, b3_ref,
                w7_ref, b7_ref, w9_ref, b9_ref, w11_ref, b11_ref, o_ref):
    wdt = w2_ref.dtype          # matmul operand dtype (f32 or bf16)
    f32 = jnp.float32

    # L1: Conv1d(1, 32, k=1, s=2) at the only surviving position  + L2 LeakyReLU
    # Cin=1  ->  plain broadcast multiply on the VPU (no K=1 MXU op).
    h = _leaky(x_ref[...] * w1_ref[...] + b1_ref[...])                 # (TB, 32)

    # L3: Conv1d(32, 64, k=1, s=2) + L4 LeakyReLU
    h = _leaky(jnp.dot(h.astype(wdt), w2_ref[...],
                       preferred_element_type=f32) + b2_ref[...])       # (TB, 64)

    # L5: Conv1d(64, 128, k=1, s=2) + L6 LeakyReLU
    h = _leaky(jnp.dot(h.astype(wdt), w3_ref[...],
                       preferred_element_type=f32) + b3_ref[...])       # (TB, 128)

    # x.view(1, 128) is a no-op in this layout (spatial length is already 1).

    # L7: Linear(128, 220) + L8 LeakyReLU   (220 zero-padded to 256 lanes)
    h = _leaky(jnp.dot(h.astype(wdt), w7_ref[...],
                       preferred_element_type=f32) + b7_ref[...])       # (TB, 256)

    # L9: Linear(220, 220) + L10 ReLU       (padded lanes stay exactly 0)
    h = jnp.maximum(jnp.dot(h.astype(wdt), w9_ref[...],
                            preferred_element_type=f32) + b9_ref[...], 0.0)  # (TB, 256)

    # L11: Linear(220, 1)  -> multiply + lane reduce (avoids an N=1 MXU op)
    o_ref[...] = (jnp.sum(h * w11_ref[...], axis=1, keepdims=True)
                  + b11_ref[...])                                       # (TB, 1)


def prep_params(p, weight_dtype=jnp.bfloat16):
    """One-time rearrangement of PyTorch-shaped params into kernel layouts.

    Conv weights -> (Cin, Cout); Linear weights -> (in, out); 220-sized dims
    zero-padded to 256.  The padding is numerically inert: padded biases are
    zero, so LeakyReLU / ReLU keep padded lanes at exactly 0 and padded rows
    of downstream weights are zero.  Heavy matrices are cast to weight_dtype
    (bf16 halves the dominant HBM->VMEM weight DMA on v6e/v7x).
    """
    f32 = jnp.float32
    w7 = jnp.zeros((128, 256), f32).at[:, :220].set(p['w7'].T)
    b7 = jnp.zeros((1, 256), f32).at[:, :220].set(p['b7'])
    w9 = jnp.zeros((256, 256), f32).at[:220, :220].set(p['w9'].T)
    b9 = jnp.zeros((1, 256), f32).at[:, :220].set(p['b9'])
    w11 = jnp.zeros((1, 256), f32).at[:, :220].set(p['w11'])
    b11 = p['b11'].reshape(1, 1).astype(f32)
    wd = weight_dtype
    return (
        p['w1'][:, :, 0].T.astype(f32),       # (1, 32)   used as a broadcast
        p['b1'].reshape(1, 32).astype(f32),
        p['w2'][:, :, 0].T.astype(wd),        # (32, 64)
        p['b2'].reshape(1, 64).astype(f32),
        p['w3'][:, :, 0].T.astype(wd),        # (64, 128)
        p['b3'].reshape(1, 128).astype(f32),
        w7.astype(wd), b7,                    # (128, 256), (1, 256)
        w9.astype(wd), b9,                    # (256, 256), (1, 256)
        w11, b11,                             # (1, 256),   (1, 1)   kept f32
    )


def discriminator_forward(x_ncl, prepped):
    """x_ncl: (B, 1, 8) float32 NCL batch (B=1 matches the PyTorch module
    exactly).  Returns (B, 1) float32 logits."""
    B = x_ncl.shape[0]
    # k=1 / stride=2 convs: after three layers only input position 0 survives.
    x0 = x_ncl[:, 0, 0:1].astype(jnp.float32)             # (B, 1)

    TB = min(128, _round_up(B, 8))                        # batch tile
    Bp = _round_up(B, TB)
    if Bp != B:
        x0 = jnp.pad(x0, ((0, Bp - B), (0, 0)))
    grid = (Bp // TB,)

    row_spec = pl.BlockSpec((TB, 1), lambda i: (i, 0))
    # Full-extent blocks with a constant index_map -> weights stay resident
    # in VMEM across all grid steps (~300 KB total, trivially within budget).
    const_spec = lambda a: pl.BlockSpec(a.shape, lambda i: (0, 0))

    out = pl.pallas_call(
        disc_kernel,
        out_shape=jax.ShapeDtypeStruct((Bp, 1), jnp.float32),
        grid=grid,
        in_specs=[row_spec] + [const_spec(a) for a in prepped],
        out_specs=row_spec,
        compiler_params=pltpu.CompilerParams(
            dimension_semantics=("parallel",)),
    )(x0, *prepped)
    return out[:B]


def ref_forward(x, p):
    """Pure-JAX reference: the PyTorch forward applied per sample (B=1 is the
    module verbatim)."""
    def conv1d_k1_s2(h, w, b):
        hs = h[:, :, ::2]
        return jnp.einsum('oc,ncl->nol', w[:, :, 0], hs) + b[None, :, None]

    lrelu = lambda v: jnp.where(v > 0, v, LEAK * v)
    h = lrelu(conv1d_k1_s2(x, p['w1'], p['b1']))
    h = lrelu(conv1d_k1_s2(h, p['w2'], p['b2']))
    h = lrelu(conv1d_k1_s2(h, p['w3'], p['b3']))
    h = h.reshape(-1, 128)                    # per-sample x.view(1, 128)
    h = lrelu(h @ p['w7'].T + p['b7'])
    h = jnp.maximum(h @ p['w9'].T + p['b9'], 0.0)
    return h @ p['w11'].T + p['b11']


if __name__ == "__main__":
    key = jax.random.PRNGKey(0)
    keys = jax.random.split(key, 13)

    def u(k, shape, fan_in):
        bound = 1.0 / jnp.sqrt(jnp.float32(fan_in))
        return jax.random.uniform(k, shape, jnp.float32, -bound, bound)

    # PyTorch-shaped parameters, deterministically initialized.
    params = {
        'w1': u(keys[0], (32, 1, 1), 1),     'b1': u(keys[1], (32,), 1),
        'w2': u(keys[2], (64, 32, 1), 32),   'b2': u(keys[3], (64,), 32),
        'w3': u(keys[4], (128, 64, 1), 64),  'b3': u(keys[5], (128,), 64),
        'w7': u(keys[6], (220, 128), 128),   'b7': u(keys[7], (220,), 128),
        'w9': u(keys[8], (220, 220), 220),   'b9': u(keys[9], (220,), 220),
        'w11': u(keys[10], (1, 220), 220),   'b11': u(keys[11], (1,), 220),
    }

    # Per-sample input is pinned to (1, 8) by x.view(1, 128) in the module;
    # the kernel batches B such samples to fill the MXU M dimension.
    B = 8
    x = jax.random.normal(keys[12], (B, 1, 8), jnp.float32)

    fwd = jax.jit(discriminator_forward)
    ref = ref_forward(x, params)

    # Exact-semantics config: f32 weights.
    out_f32 = fwd(x, prep_params(params, jnp.float32))
    jax.block_until_ready(out_f32)
    assert out_f32.shape == (B, 1)
    assert jnp.allclose(out_f32, ref, atol=1e-3, rtol=1e-3), (out_f32, ref)

    # Perf config (v6e/v7x): bf16 weights at the MXU dots, f32 elementwise.
    out_bf16 = fwd(x, prep_params(params, jnp.bfloat16))
    jax.block_until_ready(out_bf16)
    assert out_bf16.shape == (B, 1)
    assert jnp.allclose(out_bf16, ref, atol=5e-2, rtol=5e-2), (out_bf16, ref)

    print("KERNEL_OK")
</pallas_src>

<mosaic_0001>
module attributes {stable_mosaic.version = 11 : i64} {
  func.func @disc_kernel(%arg0: i32, %arg1: memref<8x1xf32, #tpu.memory_space<vmem>>, %arg2: memref<1x32xf32, #tpu.memory_space<vmem>>, %arg3: memref<1x32xf32, #tpu.memory_space<vmem>>, %arg4: memref<32x64xf32, #tpu.memory_space<vmem>>, %arg5: memref<1x64xf32, #tpu.memory_space<vmem>>, %arg6: memref<64x128xf32, #tpu.memory_space<vmem>>, %arg7: memref<1x128xf32, #tpu.memory_space<vmem>>, %arg8: memref<128x256xf32, #tpu.memory_space<vmem>>, %arg9: memref<1x256xf32, #tpu.memory_space<vmem>>, %arg10: memref<256x256xf32, #tpu.memory_space<vmem>>, %arg11: memref<1x256xf32, #tpu.memory_space<vmem>>, %arg12: memref<1x256xf32, #tpu.memory_space<vmem>>, %arg13: memref<1x1xf32, #tpu.memory_space<vmem>>, %arg14: memref<8x1xf32, #tpu.memory_space<vmem>>) attributes {dimension_semantics = [#tpu.dimension_semantics<parallel>], iteration_bounds = array<i64: 1>, scalar_prefetch = 0 : i64, scratch_operands = 0 : i64, tpu.core_type = #tpu.core_type<tc>, window_params = [{transform_indices = @transform_0, window_bounds = array<i64: 8, 1>}, {pipeline_mode = #tpu.pipeline_mode<synchronous>, transform_indices = @transform_1, window_bounds = array<i64: 1, 32>}, {pipeline_mode = #tpu.pipeline_mode<synchronous>, transform_indices = @transform_2, window_bounds = array<i64: 1, 32>}, {pipeline_mode = #tpu.pipeline_mode<synchronous>, transform_indices = @transform_3, window_bounds = array<i64: 32, 64>}, {pipeline_mode = #tpu.pipeline_mode<synchronous>, transform_indices = @transform_4, window_bounds = array<i64: 1, 64>}, {pipeline_mode = #tpu.pipeline_mode<synchronous>, transform_indices = @transform_5, window_bounds = array<i64: 64, 128>}, {pipeline_mode = #tpu.pipeline_mode<synchronous>, transform_indices = @transform_6, window_bounds = array<i64: 1, 128>}, {pipeline_mode = #tpu.pipeline_mode<synchronous>, transform_indices = @transform_7, window_bounds = array<i64: 128, 256>}, {pipeline_mode = #tpu.pipeline_mode<synchronous>, transform_indices = @transform_8, window_bounds = array<i64: 1, 256>}, {pipeline_mode = #tpu.pipeline_mode<synchronous>, transform_indices = @transform_9, window_bounds = array<i64: 256, 256>}, {pipeline_mode = #tpu.pipeline_mode<synchronous>, transform_indices = @transform_10, window_bounds = array<i64: 1, 256>}, {pipeline_mode = #tpu.pipeline_mode<synchronous>, transform_indices = @transform_11, window_bounds = array<i64: 1, 256>}, {pipeline_mode = #tpu.pipeline_mode<synchronous>, transform_indices = @transform_12, window_bounds = array<i64: 1, 1>}, {transform_indices = @transform_13, window_bounds = array<i64: 8, 1>}]} {
    %c0 = arith.constant 0 : index
    %c0_0 = arith.constant 0 : index
    %0 = vector.load %arg1[%c0, %c0_0] : memref<8x1xf32, #tpu.memory_space<vmem>>, vector<8x1xf32>
    %c0_1 = arith.constant 0 : index
    %c0_2 = arith.constant 0 : index
    %1 = vector.load %arg2[%c0_1, %c0_2] : memref<1x32xf32, #tpu.memory_space<vmem>>, vector<1x32xf32>
    %2 = vector.broadcast %0 : vector<8x1xf32> to vector<8x32xf32>
    %3 = vector.broadcast %1 : vector<1x32xf32> to vector<8x32xf32>
    %4 = arith.mulf %2, %3 : vector<8x32xf32>
    %c0_3 = arith.constant 0 : index
    %c0_4 = arith.constant 0 : index
    %5 = vector.load %arg3[%c0_3, %c0_4] : memref<1x32xf32, #tpu.memory_space<vmem>>, vector<1x32xf32>
    %6 = vector.broadcast %5 : vector<1x32xf32> to vector<8x32xf32>
    %7 = arith.addf %4, %6 : vector<8x32xf32>
    %cst = arith.constant 0.000000e+00 : f32
    %8 = vector.broadcast %cst : f32 to vector<8x32xf32>
    %9 = arith.cmpf ogt, %7, %8 : vector<8x32xf32>
    %cst_5 = arith.constant 0.00999999977 : f32
    %10 = vector.broadcast %cst_5 : f32 to vector<8x32xf32>
    %11 = arith.mulf %10, %7 : vector<8x32xf32>
    %12 = arith.select %9, %7, %11 : vector<8x32xi1>, vector<8x32xf32>
    %c0_6 = arith.constant 0 : index
    %c0_7 = arith.constant 0 : index
    %13 = vector.load %arg4[%c0_6, %c0_7] : memref<32x64xf32, #tpu.memory_space<vmem>>, vector<32x64xf32>
    %cst_8 = arith.constant dense<0.000000e+00> : vector<8x64xf32>
    %14 = tpu.matmul %12, %13, %cst_8 {dimension_numbers = #tpu.dot_dimension_numbers<[1], [0], [0], [1], [0, 0, 1, 1], [], []>} : vector<8x32xf32>, vector<32x64xf32>, vector<8x64xf32> -> vector<8x64xf32>
    %c0_9 = arith.constant 0 : index
    %c0_10 = arith.constant 0 : index
    %15 = vector.load %arg5[%c0_9, %c0_10] : memref<1x64xf32, #tpu.memory_space<vmem>>, vector<1x64xf32>
    %16 = vector.broadcast %15 : vector<1x64xf32> to vector<8x64xf32>
    %17 = arith.addf %14, %16 : vector<8x64xf32>
    %cst_11 = arith.constant 0.000000e+00 : f32
    %18 = vector.broadcast %cst_11 : f32 to vector<8x64xf32>
    %19 = arith.cmpf ogt, %17, %18 : vector<8x64xf32>
    %cst_12 = arith.constant 0.00999999977 : f32
    %20 = vector.broadcast %cst_12 : f32 to vector<8x64xf32>
    %21 = arith.mulf %20, %17 : vector<8x64xf32>
    %22 = arith.select %19, %17, %21 : vector<8x64xi1>, vector<8x64xf32>
    %c0_13 = arith.constant 0 : index
    %c0_14 = arith.constant 0 : index
    %23 = vector.load %arg6[%c0_13, %c0_14] : memref<64x128xf32, #tpu.memory_space<vmem>>, vector<64x128xf32>
    %cst_15 = arith.constant dense<0.000000e+00> : vector<8x128xf32>
    %24 = tpu.matmul %22, %23, %cst_15 {dimension_numbers = #tpu.dot_dimension_numbers<[1], [0], [0], [1], [0, 0, 1, 1], [], []>} : vector<8x64xf32>, vector<64x128xf32>, vector<8x128xf32> -> vector<8x128xf32>
    %c0_16 = arith.constant 0 : index
    %c0_17 = arith.constant 0 : index
    %25 = vector.load %arg7[%c0_16, %c0_17] : memref<1x128xf32, #tpu.memory_space<vmem>>, vector<1x128xf32>
    %26 = vector.broadcast %25 : vector<1x128xf32> to vector<8x128xf32>
    %27 = arith.addf %24, %26 : vector<8x128xf32>
    %cst_18 = arith.constant 0.000000e+00 : f32
    %28 = vector.broadcast %cst_18 : f32 to vector<8x128xf32>
    %29 = arith.cmpf ogt, %27, %28 : vector<8x128xf32>
    %cst_19 = arith.constant 0.00999999977 : f32
    %30 = vector.broadcast %cst_19 : f32 to vector<8x128xf32>
    %31 = arith.mulf %30, %27 : vector<8x128xf32>
    %32 = arith.select %29, %27, %31 : vector<8x128xi1>, vector<8x128xf32>
    %c0_20 = arith.constant 0 : index
    %c0_21 = arith.constant 0 : index
    %33 = vector.load %arg8[%c0_20, %c0_21] : memref<128x256xf32, #tpu.memory_space<vmem>>, vector<128x256xf32>
    %cst_22 = arith.constant dense<0.000000e+00> : vector<8x256xf32>
    %34 = tpu.matmul %32, %33, %cst_22 {dimension_numbers = #tpu.dot_dimension_numbers<[1], [0], [0], [1], [0, 0, 1, 1], [], []>} : vector<8x128xf32>, vector<128x256xf32>, vector<8x256xf32> -> vector<8x256xf32>
    %c0_23 = arith.constant 0 : index
    %c0_24 = arith.constant 0 : index
    %35 = vector.load %arg9[%c0_23, %c0_24] : memref<1x256xf32, #tpu.memory_space<vmem>>, vector<1x256xf32>
    %36 = vector.broadcast %35 : vector<1x256xf32> to vector<8x256xf32>
    %37 = arith.addf %34, %36 : vector<8x256xf32>
    %cst_25 = arith.constant 0.000000e+00 : f32
    %38 = vector.broadcast %cst_25 : f32 to vector<8x256xf32>
    %39 = arith.cmpf ogt, %37, %38 : vector<8x256xf32>
    %cst_26 = arith.constant 0.00999999977 : f32
    %40 = vector.broadcast %cst_26 : f32 to vector<8x256xf32>
    %41 = arith.mulf %40, %37 : vector<8x256xf32>
    %42 = arith.select %39, %37, %41 : vector<8x256xi1>, vector<8x256xf32>
    %c0_27 = arith.constant 0 : index
    %c0_28 = arith.constant 0 : index
    %43 = vector.load %arg10[%c0_27, %c0_28] : memref<256x256xf32, #tpu.memory_space<vmem>>, vector<256x256xf32>
    %cst_29 = arith.constant dense<0.000000e+00> : vector<8x256xf32>
    %44 = tpu.matmul %42, %43, %cst_29 {dimension_numbers = #tpu.dot_dimension_numbers<[1], [0], [0], [1], [0, 0, 1, 1], [], []>} : vector<8x256xf32>, vector<256x256xf32>, vector<8x256xf32> -> vector<8x256xf32>
    %c0_30 = arith.constant 0 : index
    %c0_31 = arith.constant 0 : index
    %45 = vector.load %arg11[%c0_30, %c0_31] : memref<1x256xf32, #tpu.memory_space<vmem>>, vector<1x256xf32>
    %46 = vector.broadcast %45 : vector<1x256xf32> to vector<8x256xf32>
    %47 = arith.addf %44, %46 : vector<8x256xf32>
    %cst_32 = arith.constant 0.000000e+00 : f32
    %48 = vector.broadcast %cst_32 : f32 to vector<8x256xf32>
    %49 = arith.maximumf %47, %48 : vector<8x256xf32>
    %c0_33 = arith.constant 0 : index
    %c0_34 = arith.constant 0 : index
    %50 = vector.load %arg12[%c0_33, %c0_34] : memref<1x256xf32, #tpu.memory_space<vmem>>, vector<1x256xf32>
    %51 = vector.broadcast %50 : vector<1x256xf32> to vector<8x256xf32>
    %52 = arith.mulf %49, %51 : vector<8x256xf32>
    %cst_35 = arith.constant dense<0.000000e+00> : vector<8xf32>
    %53 = vector.multi_reduction <add>, %52, %cst_35 [1] : vector<8x256xf32> to vector<8xf32>
    %54 = vector.shape_cast %53 : vector<8xf32> to vector<8x1xf32>
    %c0_36 = arith.constant 0 : index
    %c0_37 = arith.constant 0 : index
    %55 = vector.load %arg13[%c0_36, %c0_37] : memref<1x1xf32, #tpu.memory_space<vmem>>, vector<1x1xf32>
    %56 = vector.broadcast %55 : vector<1x1xf32> to vector<8x1xf32>
    %57 = arith.addf %54, %56 : vector<8x1xf32>
    %c0_38 = arith.constant 0 : index
    %c0_39 = arith.constant 0 : index
    %58 = vector.load %arg14[%c0_38, %c0_39] : memref<8x1xf32, #tpu.memory_space<vmem>>, vector<8x1xf32>
    tpu.vector_store %arg14[%c0_38, %c0_39], %57 {strides = array<i32>} : memref<8x1xf32, #tpu.memory_space<vmem>>, vector<8x1xf32>,
    return
  }
  func.func @transform_0(%arg0: i32) -> (i32, i32) {
    %c0_i32 = arith.constant 0 : i32
    %c0_i32_0 = arith.constant 0 : i32
    return %arg0, %c0_i32 : i32, i32
  }
  func.func @transform_1(%arg0: i32) -> (i32, i32) {
    %c0_i32 = arith.constant 0 : i32
    %c0_i32_0 = arith.constant 0 : i32
    %c0_i32_1 = arith.constant 0 : i32
    return %c0_i32, %c0_i32_0 : i32, i32
  }
  func.func @transform_2(%arg0: i32) -> (i32, i32) {
    %c0_i32 = arith.constant 0 : i32
    %c0_i32_0 = arith.constant 0 : i32
    %c0_i32_1 = arith.constant 0 : i32
    return %c0_i32, %c0_i32_0 : i32, i32
  }
  func.func @transform_3(%arg0: i32) -> (i32, i32) {
    %c0_i32 = arith.constant 0 : i32
    %c0_i32_0 = arith.constant 0 : i32
    %c0_i32_1 = arith.constant 0 : i32
    return %c0_i32, %c0_i32_0 : i32, i32
  }
  func.func @transform_4(%arg0: i32) -> (i32, i32) {
    %c0_i32 = arith.constant 0 : i32
    %c0_i32_0 = arith.constant 0 : i32
    %c0_i32_1 = arith.constant 0 : i32
    return %c0_i32, %c0_i32_0 : i32, i32
  }
  func.func @transform_5(%arg0: i32) -> (i32, i32) {
    %c0_i32 = arith.constant 0 : i32
    %c0_i32_0 = arith.constant 0 : i32
    %c0_i32_1 = arith.constant 0 : i32
    return %c0_i32, %c0_i32_0 : i32, i32
  }
  func.func @transform_6(%arg0: i32) -> (i32, i32) {
    %c0_i32 = arith.constant 0 : i32
    %c0_i32_0 = arith.constant 0 : i32
    %c0_i32_1 = arith.constant 0 : i32
    return %c0_i32, %c0_i32_0 : i32, i32
  }
  func.func @transform_7(%arg0: i32) -> (i32, i32) {
    %c0_i32 = arith.constant 0 : i32
    %c0_i32_0 = arith.constant 0 : i32
    %c0_i32_1 = arith.constant 0 : i32
    return %c0_i32, %c0_i32_0 : i32, i32
  }
  func.func @transform_8(%arg0: i32) -> (i32, i32) {
    %c0_i32 = arith.constant 0 : i32
    %c0_i32_0 = arith.constant 0 : i32
    %c0_i32_1 = arith.constant 0 : i32
    return %c0_i32, %c0_i32_0 : i32, i32
  }
  func.func @transform_9(%arg0: i32) -> (i32, i32) {
    %c0_i32 = arith.constant 0 : i32
    %c0_i32_0 = arith.constant 0 : i32
    %c0_i32_1 = arith.constant 0 : i32
    return %c0_i32, %c0_i32_0 : i32, i32
  }
  func.func @transform_10(%arg0: i32) -> (i32, i32) {
    %c0_i32 = arith.constant 0 : i32
    %c0_i32_0 = arith.constant 0 : i32
    %c0_i32_1 = arith.constant 0 : i32
    return %c0_i32, %c0_i32_0 : i32, i32
  }
  func.func @transform_11(%arg0: i32) -> (i32, i32) {
    %c0_i32 = arith.constant 0 : i32
    %c0_i32_0 = arith.constant 0 : i32
    %c0_i32_1 = arith.constant 0 : i32
    return %c0_i32, %c0_i32_0 : i32, i32
  }
  func.func @transform_12(%arg0: i32) -> (i32, i32) {
    %c0_i32 = arith.constant 0 : i32
    %c0_i32_0 = arith.constant 0 : i32
    %c0_i32_1 = arith.constant 0 : i32
    return %c0_i32, %c0_i32_0 : i32, i32
  }
  func.func @transform_13(%arg0: i32) -> (i32, i32) {
    %c0_i32 = arith.constant 0 : i32
    %c0_i32_0 = arith.constant 0 : i32
    return %arg0, %c0_i32 : i32, i32
  }
}

</mosaic_0001>

<llo_original>
// kernel: discriminator_forward.1
$region0: #{discriminator_forward.1}
  #allocation0 [shape = 'u32[]', space=smem, size = 0x4, offset = 0x4, fixed_abs, tag = 'smem constant byte address 0x4 - core index']
  #allocation1 [shape = 'u32[144,128]{1,0:T(1,128)}', space=vmem, size = 0x12000, scoped, tag = 'internal scratch']
  #allocation2 [shape = 'f32[1,1]{1,0:T(1,128)S(1)}', space=vmem, size = 0x200, scoped, tag = 'scoped memory for discriminator_forward.1']
  %s0 = inlined_call_operand.vmem [shape: f32[8,1], index: 0, kind: input, shape index: {}]
  %s1 = inlined_call_operand.vmem [shape: f32[1,32], index: 1, kind: input, shape index: {}]
  %s2 = inlined_call_operand.vmem [shape: f32[1,32], index: 2, kind: input, shape index: {}]
  %s3 = inlined_call_operand.hbm [shape: f32[32,64], index: 3, kind: input, shape index: {}]
  %s4 = inlined_call_operand.vmem [shape: f32[1,64], index: 4, kind: input, shape index: {}]
  %s5 = inlined_call_operand.hbm [shape: f32[64,128], index: 5, kind: input, shape index: {}]
  %s6 = inlined_call_operand.vmem [shape: f32[1,128], index: 6, kind: input, shape index: {}]
  %s7 = inlined_call_operand.hbm [shape: f32[128,256], index: 7, kind: input, shape index: {}]
  %s8 = inlined_call_operand.vmem [shape: f32[1,256], index: 8, kind: input, shape index: {}]
  %s9 = inlined_call_operand.hbm [shape: f32[256,256], index: 9, kind: input, shape index: {}]
  %s10 = inlined_call_operand.vmem [shape: f32[1,256], index: 10, kind: input, shape index: {}]
  %s11 = inlined_call_operand.vmem [shape: f32[1,256], index: 11, kind: input, shape index: {}]
  %s12 = inlined_call_operand.<no memory space> [shape: f32[1,1], index: 12, kind: input, shape index: {}]
  %s13 = inlined_call_operand.vmem [shape: f32[8,1], index: 13, kind: output, shape index: {}]
  %s14 = sld [smem:[#allocation0]]
  $region78: #{discriminator_forward.1} parent=0
    _
  %s16 = ssub.s32 1, %s14
  %s17 = scalar_select 0, %s16, %s14
  %v18 = vstv %s12
  %19 = vst [vmem:[#allocation2] sm:$0x1] %v18
  $region1: #{discriminator_forward.1} parent=0
    #allocation3 [shape = 'u8[16384]{0}', space=vmem, size = 0x4000, scoped, tag = 'input window, operand 3, single buffered']
    #allocation4 [shape = 's32[1]{0}', space=sflag, size = 0x4, scoped, tag = 'scoped memory for discriminator_forward.1']
    #allocation5 [shape = 'u8[32768]{0}', space=vmem, size = 0x8000, scoped, tag = 'input window, operand 5, single buffered']
    #allocation6 [shape = 's32[1]{0}', space=sflag, size = 0x4, scoped, tag = 'scoped memory for discriminator_forward.1']
    #allocation7 [shape = 'u8[131072]{0}', space=vmem, size = 0x20000, scoped, tag = 'input window, operand 7, single buffered']
    #allocation8 [shape = 'u8[262144]{0}', space=vmem, size = 0x40000, scoped, tag = 'input window, operand 9, single buffered']
    #allocation9 [shape = 's32[1]{0}', space=sflag, size = 0x4, scoped, tag = 'scoped memory for discriminator_forward.1']
    %20 = vsyncpa [#allocation4], 0
    %21 = vsyncpa [#allocation6], 0
    %22 = vsyncpa [#allocation9], 0
    // Predicated region
    $region2: #{discriminator_forward.1} parent=1 // pred_check
      _
    $region3: #{discriminator_forward.1} parent=1 // pred_check_branch
      %24 = sbr.rel (0) target = $region5
    $region4: #{discriminator_forward.1} parent=1 // pred_region
      _
    $region5: #{discriminator_forward.1} parent=1 // pred_fallthru
      _
    // Predicated region
    $region6: #{discriminator_forward.1} parent=1 // pred_check
      _
    $region7: #{discriminator_forward.1} parent=1 // pred_check_branch
      %26 = sbr.rel (0) target = $region9
    $region8: #{discriminator_forward.1} parent=1 // pred_region
      _
    $region9: #{discriminator_forward.1} parent=1 // pred_fallthru
      _
    // Predicated region
    $region10: #{discriminator_forward.1} parent=1 // pred_check
      _
    $region11: #{discriminator_forward.1} parent=1 // pred_check_branch
      %28 = sbr.rel (0) target = $region13
    $region12: #{discriminator_forward.1} parent=1 // pred_region
      _
    $region13: #{discriminator_forward.1} parent=1 // pred_fallthru
      _
    // Predicated region
    $region14: #{discriminator_forward.1} parent=1 // pred_check
      _
    $region15: #{discriminator_forward.1} parent=1 // pred_check_branch
      %30 = sbr.rel (0) target = $region17
    $region16: #{discriminator_forward.1} parent=1 // pred_region
      %s32 = ssub.s32 512, 512
      %33 = vsyncadd [#allocation4], %s32
      %s34 = sshll.u32 [#allocation3], 4
      %s35 = int_to_ptr.vmem [resolvable:$true] %s34
      %40 = dma.hbm_to_vmem [thread:$0]  %s3, 512, %s35, [#allocation4], 128, 128, 8
    $region17: #{discriminator_forward.1} parent=1 // pred_fallthru
      _
    // Predicated region
    $region18: #{discriminator_forward.1} parent=1 // pred_check
      _
    $region19: #{discriminator_forward.1} parent=1 // pred_check_branch
      %42 = sbr.rel (0) target = $region21
    $region20: #{discriminator_forward.1} parent=1 // pred_region
      _
    $region21: #{discriminator_forward.1} parent=1 // pred_fallthru
      _
    // Predicated region
    $region22: #{discriminator_forward.1} parent=1 // pred_check
      _
    $region23: #{discriminator_forward.1} parent=1 // pred_check_branch
      %44 = sbr.rel (0) target = $region25
    $region24: #{discriminator_forward.1} parent=1 // pred_region
      %s46 = ssub.s32 1024, 1024
      %47 = vsyncadd [#allocation6], %s46
      %s48 = sshll.u32 [#allocation5], 4
      %s49 = int_to_ptr.vmem [resolvable:$true] %s48
      %54 = dma.hbm_to_vmem [thread:$0]  %s5, 1024, %s49, [#allocation6], 128, 128, 8
    $region25: #{discriminator_forward.1} parent=1 // pred_fallthru
      _
    // Predicated region
    $region26: #{discriminator_forward.1} parent=1 // pred_check
      _
    $region27: #{discriminator_forward.1} parent=1 // pred_check_branch
      %56 = sbr.rel (0) target = $region29
    $region28: #{discriminator_forward.1} parent=1 // pred_region
      _
    $region29: #{discriminator_forward.1} parent=1 // pred_fallthru
      _
    // Predicated region
    $region30: #{discriminator_forward.1} parent=1 // pred_check
      _
    $region31: #{discriminator_forward.1} parent=1 // pred_check_branch
      %58 = sbr.rel (0) target = $region33
    $region32: #{discriminator_forward.1} parent=1 // pred_region
      %s60 = ssub.s32 4096, 4096
      %61 = vsyncadd [#allocation6], %s60
      %s62 = sshll.u32 [#allocation7], 4
      %s63 = int_to_ptr.vmem [resolvable:$true] %s62
      %68 = dma.hbm_to_vmem [thread:$0]  %s7, 4096, %s63, [#allocation6], 256, 256, 16
    $region33: #{discriminator_forward.1} parent=1 // pred_fallthru
      _
    // Predicated region
    $region34: #{discriminator_forward.1} parent=1 // pred_check
      _
    $region35: #{discriminator_forward.1} parent=1 // pred_check_branch
      %70 = sbr.rel (0) target = $region37
    $region36: #{discriminator_forward.1} parent=1 // pred_region
      _
    $region37: #{discriminator_forward.1} parent=1 // pred_fallthru
      _
    // Predicated region
    $region38: #{discriminator_forward.1} parent=1 // pred_check
      _
    $region39: #{discriminator_forward.1} parent=1 // pred_check_branch
      %72 = sbr.rel (0) target = $region41
    $region40: #{discriminator_forward.1} parent=1 // pred_region
      %s74 = ssub.s32 8192, 8192
      %75 = vsyncadd [#allocation9], %s74
      %s76 = sshll.u32 [#allocation8], 4
      %s77 = int_to_ptr.vmem [resolvable:$true] %s76
      %82 = dma.hbm_to_vmem [thread:$0]  %s9, 8192, %s77, [#allocation9], 256, 256, 16
    $region41: #{discriminator_forward.1} parent=1 // pred_fallthru
      _
    // Predicated region
    $region42: #{discriminator_forward.1} parent=1 // pred_check
      _
    $region43: #{discriminator_forward.1} parent=1 // pred_check_branch
      %84 = sbr.rel (0) target = $region45
    $region44: #{discriminator_forward.1} parent=1 // pred_region
      _
    $region45: #{discriminator_forward.1} parent=1 // pred_fallthru
      _
    // Predicated region
    $region46: #{discriminator_forward.1} parent=1 // pred_check
      _
    $region47: #{discriminator_forward.1} parent=1 // pred_check_branch
      %86 = sbr.rel (0) target = $region49
    $region48: #{discriminator_forward.1} parent=1 // pred_region
      _
    $region49: #{discriminator_forward.1} parent=1 // pred_fallthru
      _
    // Predicated region
    $region50: #{discriminator_forward.1} parent=1 // pred_check
      _
    $region51: #{discriminator_forward.1} parent=1 // pred_check_branch
      %88 = sbr.rel (0) target = $region53
    $region52: #{discriminator_forward.1} parent=1 // pred_region
      _
    $region53: #{discriminator_forward.1} parent=1 // pred_fallthru
      _
    // Predicated region
    $region54: #{discriminator_forward.1} parent=1 // pred_check
      _
    $region55: #{discriminator_forward.1} parent=1 // pred_check_branch
      %90 = sbr.rel (0) target = $region57
    $region56: #{discriminator_forward.1} parent=1 // pred_region
      %91 = dma.done [#allocation4], 512
    $region57: #{discriminator_forward.1} parent=1 // pred_fallthru
      _
    // Predicated region
    $region58: #{discriminator_forward.1} parent=1 // pred_check
      _
    $region59: #{discriminator_forward.1} parent=1 // pred_check_branch
      %93 = sbr.rel (0) target = $region61
    $region60: #{discriminator_forward.1} parent=1 // pred_region
      %94 = dma.done [#allocation6], 1024
    $region61: #{discriminator_forward.1} parent=1 // pred_fallthru
      _
    // Predicated region
    $region62: #{discriminator_forward.1} parent=1 // pred_check
      _
    $region63: #{discriminator_forward.1} parent=1 // pred_check_branch
      %96 = sbr.rel (0) target = $region65
    $region64: #{discriminator_forward.1} parent=1 // pred_region
      %97 = dma.done [#allocation6], 4096
    $region65: #{discriminator_forward.1} parent=1 // pred_fallthru
      _
    // Predicated region
    $region66: #{discriminator_forward.1} parent=1 // pred_check
      _
    $region67: #{discriminator_forward.1} parent=1 // pred_check_branch
      %99 = sbr.rel (0) target = $region69
    $region68: #{discriminator_forward.1} parent=1 // pred_region
      %100 = dma.done [#allocation9], 8192
    $region69: #{discriminator_forward.1} parent=1 // pred_fallthru
      _
    %v101 = vld [vmem:[%s0] sm:$0xff]
    %v102 = vld [vmem:[%s1] sm:$0x1]
    %104 = vset.pattern.permute.xlu0 0
    %105 = vperm.xlu0 %104, %v101
    %v106 = vpop.permute.xlu0 %105
    %v109 = vlaneseq
    %v110 = vshrl.u32 %v109, 7
    %v111 = vsub.s32 0, %v110
    %v112 = vrot.slane %v102, %v111
    %v114 = vmul.f32 %v106, %v112
    %v115 = vld [vmem:[%s2] sm:$0x1]
    %v117 = vlaneseq
    %v118 = vshrl.u32 %v117, 7
    %v119 = vsub.s32 0, %v118
    %v120 = vrot.slane %v115, %v119
    %v122 = vadd.f32 %v114, %v120
    %vm123 = vcmp.gt.f32.partialorder %v122, 0.0
    %v124 = vmul.f32 %v122, 0.01
    %v125 = vsel %vm123, %v122, %v124
    %v126 = vld [vmem:[#allocation3] sm:$0xff]
    %v127 = vld [vmem:[#allocation3 + $0x8] sm:$0xff]
    %v128 = vld [vmem:[#allocation3 + $0x10] sm:$0xff]
    %v129 = vld [vmem:[#allocation3 + $0x18] sm:$0xff]
    %v130 = vld [vmem:[%s4] sm:$0x1]
    %v132 = vlaneseq
    %v133 = vshrl.u32 %v132, 7
    %v134 = vsub.s32 0, %v133
    %v135 = vrot.slane %v130, %v134
    %vm137 = vcmask 261120
    %v139 = vsel %vm137, %v125, 0
    %141 = vmatprep.subr.mxu0 0.0
    %142 = vmatpush1.msra.mxu0 %v126
    %143 = vmatprep.subr.mxu0 0.0
    %144 = vmatpush1.msra.mxu0 %v127
    %145 = vmatprep.subr.mxu0 0.0
    %146 = vmatpush1.msra.mxu0 %v128
    %147 = vmatprep.subr.mxu0 0.0
    %148 = vmatpush1.msra.mxu0 %v129
    %149 = vmatprep.subr.mxu0 0.0
    %150 = vmatpush1.msra.mxu0 0.0
    %151 = vmatprep.subr.mxu0 0.0
    %152 = vmatpush1.msra.mxu0 0.0
    %153 = vmatprep.subr.mxu0 0.0
    %154 = vmatpush1.msra.mxu0 0.0
    %155 = vmatprep.subr.mxu0 0.0
    %156 = vmatpush1.msra.mxu0 0.0
    %157 = vmatprep.subr.mxu0 0.0
    %158 = vmatpush1.msra.mxu0 0.0
    %159 = vmatprep.subr.mxu0 0.0
    %160 = vmatpush1.msra.mxu0 0.0
    %161 = vmatprep.subr.mxu0 0.0
    %162 = vmatpush1.msra.mxu0 0.0
    %163 = vmatprep.subr.mxu0 0.0
    %164 = vmatpush1.msra.mxu0 0.0
    %165 = vmatprep.subr.mxu0 0.0
    %166 = vmatpush1.msra.mxu0 0.0
    %167 = vmatprep.subr.mxu0 0.0
    %168 = vmatpush1.msra.mxu0 0.0
    %169 = vmatprep.subr.mxu0 0.0
    %170 = vmatpush1.msra.mxu0 0.0
    %171 = vmatprep.subr.mxu0 0.0
    %172 = vmatpush1.msra.mxu0 0.0
    %173 = vmatprep.subr.mxu0 0.0
    %174 = vmatpush1.msra.mxu0 0.0
    %175 = vmatprep.subr.mxu0 0.0
    %176 = vmatpush1.msra.mxu0 0.0
    %177 = vmatprep.subr.mxu0 0.0
    %178 = vmatpush1.msra.mxu0 0.0
    %179 = vmatprep.subr.mxu0 0.0
    %180 = vmatpush1.msra.mxu0 0.0
    %181 = vmatprep.subr.mxu0 0.0
    %182 = vmatpush1.msra.mxu0 0.0
    %183 = vmatprep.subr.mxu0 0.0
    %184 = vmatpush1.msra.mxu0 0.0
    %185 = vmatprep.subr.mxu0 0.0
    %186 = vmatpush1.msra.mxu0 0.0
    %187 = vmatprep.subr.mxu0 0.0
    %188 = vmatpush1.msra.mxu0 0.0
    %189 = vmatprep.subr.mxu0 0.0
    %190 = vmatpush1.msra.mxu0 0.0
    %191 = vmatprep.subr.mxu0 0.0
    %192 = vmatpush1.msra.mxu0 0.0
    %193 = vmatprep.subr.mxu0 0.0
    %194 = vmatpush1.msra.mxu0 0.0
    %195 = vmatprep.subr.mxu0 0.0
    %196 = vmatpush1.msra.mxu0 0.0
    %197 = vmatprep.subr.mxu0 0.0
    %198 = vmatpush1.msra.mxu0 0.0
    %199 = vmatprep.subr.mxu0 0.0
    %200 = vmatpush1.msra.mxu0 0.0
    %201 = vmatprep.subr.mxu0 0.0
    %202 = vmatpush1.msra.mxu0 0.0
    %203 = vmatprep.subr.mxu0 0.0
    %204 = vmatpush1.msra.mxu0 0.0
    %205 = vmatprep.mubr.f32.mxu0 0.0
    %206 = vmatmul.mubr.f32.gmra.mrb[0].mxu0 %v139
    %v207 = vpop.f32.mrb[0].mxu0
    %v208 = vadd.f32 %v135, %v207
    %v209 = vpop.f32.mrb[0].mxu0
    %210 = vdwg.mxu0
    %vm211 = vcmp.gt.f32.partialorder %v208, 0.0
    %v212 = vmul.f32 %v208, 0.01
    %v213 = vsel %vm211, %v208, %v212
    %v214 = vld [vmem:[#allocation5] sm:$0xff]
    %v215 = vld [vmem:[#allocation5 + $0x8] sm:$0xff]
    %v216 = vld [vmem:[#allocation5 + $0x10] sm:$0xff]
    %v217 = vld [vmem:[#allocation5 + $0x18] sm:$0xff]
    %v218 = vld [vmem:[#allocation5 + $0x20] sm:$0xff]
    %v219 = vld [vmem:[#allocation5 + $0x28] sm:$0xff]
    %v220 = vld [vmem:[#allocation5 + $0x30] sm:$0xff]
    %v221 = vld [vmem:[#allocation5 + $0x38] sm:$0xff]
    %v222 = vld [vmem:[%s6] sm:$0x1]
    %v224 = vlaneseq
    %v225 = vshrl.u32 %v224, 7
    %v226 = vsub.s32 0, %v225
    %v227 = vrot.slane %v222, %v226
    %vm229 = vcmask 523264
    %v231 = vsel %vm229, %v213, 0
    %233 = vmatprep.subr.mxu0 0.0
    %234 = vmatpush1.msra.mxu0 %v214
    %235 = vmatprep.subr.mxu0 0.0
    %236 = vmatpush1.msra.mxu0 %v215
    %237 = vmatprep.subr.mxu0 0.0
    %238 = vmatpush1.msra.mxu0 %v216
    %239 = vmatprep.subr.mxu0 0.0
    %240 = vmatpush1.msra.mxu0 %v217
    %241 = vmatprep.subr.mxu0 0.0
    %242 = vmatpush1.msra.mxu0 %v218
    %243 = vmatprep.subr.mxu0 0.0
    %244 = vmatpush1.msra.mxu0 %v219
    %245 = vmatprep.subr.mxu0 0.0
    %246 = vmatpush1.msra.mxu0 %v220
    %247 = vmatprep.subr.mxu0 0.0
    %248 = vmatpush1.msra.mxu0 %v221
    %249 = vmatprep.subr.mxu0 0.0
    %250 = vmatpush1.msra.mxu0 0.0
    %251 = vmatprep.subr.mxu0 0.0
    %252 = vmatpush1.msra.mxu0 0.0
    %253 = vmatprep.subr.mxu0 0.0
    %254 = vmatpush1.msra.mxu0 0.0
    %255 = vmatprep.subr.mxu0 0.0
    %256 = vmatpush1.msra.mxu0 0.0
    %257 = vmatprep.subr.mxu0 0.0
    %258 = vmatpush1.msra.mxu0 0.0
    %259 = vmatprep.subr.mxu0 0.0
    %260 = vmatpush1.msra.mxu0 0.0
    %261 = vmatprep.subr.mxu0 0.0
    %262 = vmatpush1.msra.mxu0 0.0
    %263 = vmatprep.subr.mxu0 0.0
    %264 = vmatpush1.msra.mxu0 0.0
    %265 = vmatprep.subr.mxu0 0.0
    %266 = vmatpush1.msra.mxu0 0.0
    %267 = vmatprep.subr.mxu0 0.0
    %268 = vmatpush1.msra.mxu0 0.0
    %269 = vmatprep.subr.mxu0 0.0
    %270 = vmatpush1.msra.mxu0 0.0
    %271 = vmatprep.subr.mxu0 0.0
    %272 = vmatpush1.msra.mxu0 0.0
    %273 = vmatprep.subr.mxu0 0.0
    %274 = vmatpush1.msra.mxu0 0.0
    %275 = vmatprep.subr.mxu0 0.0
    %276 = vmatpush1.msra.mxu0 0.0
    %277 = vmatprep.subr.mxu0 0.0
    %278 = vmatpush1.msra.mxu0 0.0
    %279 = vmatprep.subr.mxu0 0.0
    %280 = vmatpush1.msra.mxu0 0.0
    %281 = vmatprep.subr.mxu0 0.0
    %282 = vmatpush1.msra.mxu0 0.0
    %283 = vmatprep.subr.mxu0 0.0
    %284 = vmatpush1.msra.mxu0 0.0
    %285 = vmatprep.subr.mxu0 0.0
    %286 = vmatpush1.msra.mxu0 0.0
    %287 = vmatprep.subr.mxu0 0.0
    %288 = vmatpush1.msra.mxu0 0.0
    %289 = vmatprep.subr.mxu0 0.0
    %290 = vmatpush1.msra.mxu0 0.0
    %291 = vmatprep.subr.mxu0 0.0
    %292 = vmatpush1.msra.mxu0 0.0
    %293 = vmatprep.subr.mxu0 0.0
    %294 = vmatpush1.msra.mxu0 0.0
    %295 = vmatprep.subr.mxu0 0.0
    %296 = vmatpush1.msra.mxu0 0.0
    %297 = vmatprep.mubr.f32.mxu0 0.0
    %298 = vmatmul.mubr.f32.gmra.mrb[0].mxu0 %v231
    %v299 = vpop.f32.mrb[0].mxu0
    %v300 = vadd.f32 %v227, %v299
    %v301 = vpop.f32.mrb[0].mxu0
    %302 = vdwg.mxu0
    %vm303 = vcmp.gt.f32.partialorder %v300, 0.0
    %v304 = vmul.f32 %v300, 0.01
    %v305 = vsel %vm303, %v300, %v304
    %v306 = vld [vmem:[#allocation7] sm:$0xff]
    %v307 = vld [vmem:[#allocation7 + $0x8] sm:$0xff]
    %v308 = vld [vmem:[#allocation7 + $0x10] sm:$0xff]
    %v309 = vld [vmem:[#allocation7 + $0x18] sm:$0xff]
    %v310 = vld [vmem:[#allocation7 + $0x20] sm:$0xff]
    %v311 = vld [vmem:[#allocation7 + $0x28] sm:$0xff]
    %v312 = vld [vmem:[#allocation7 + $0x30] sm:$0xff]
    %v313 = vld [vmem:[#allocation7 + $0x38] sm:$0xff]
    %v314 = vld [vmem:[#allocation7 + $0x40] sm:$0xff]
    %v315 = vld [vmem:[#allocation7 + $0x48] sm:$0xff]
    %v316 = vld [vmem:[#allocation7 + $0x50] sm:$0xff]
    %v317 = vld [vmem:[#allocation7 + $0x58] sm:$0xff]
    %v318 = vld [vmem:[#allocation7 + $0x60] sm:$0xff]
    %v319 = vld [vmem:[#allocation7 + $0x68] sm:$0xff]
    %v320 = vld [vmem:[#allocation7 + $0x70] sm:$0xff]
    %v321 = vld [vmem:[#allocation7 + $0x78] sm:$0xff]
    %v322 = vld [vmem:[#allocation7 + $0x80] sm:$0xff]
    %v323 = vld [vmem:[#allocation7 + $0x88] sm:$0xff]
    %v324 = vld [vmem:[#allocation7 + $0x90] sm:$0xff]
    %v325 = vld [vmem:[#allocation7 + $0x98] sm:$0xff]
    %v326 = vld [vmem:[#allocation7 + $0xa0] sm:$0xff]
    %v327 = vld [vmem:[#allocation7 + $0xa8] sm:$0xff]
    %v328 = vld [vmem:[#allocation7 + $0xb0] sm:$0xff]
    %v329 = vld [vmem:[#allocation7 + $0xb8] sm:$0xff]
    %v330 = vld [vmem:[#allocation7 + $0xc0] sm:$0xff]
    %v331 = vld [vmem:[#allocation7 + $0xc8] sm:$0xff]
    %v332 = vld [vmem:[#allocation7 + $0xd0] sm:$0xff]
    %v333 = vld [vmem:[#allocation7 + $0xd8] sm:$0xff]
    %v334 = vld [vmem:[#allocation7 + $0xe0] sm:$0xff]
    %v335 = vld [vmem:[#allocation7 + $0xe8] sm:$0xff]
    %v336 = vld [vmem:[#allocation7 + $0xf0] sm:$0xff]
    %v337 = vld [vmem:[#allocation7 + $0xf8] sm:$0xff]
    %v338 = vld [vmem:[%s8] sm:$0x3]
    %v340 = vlaneseq
    %v341 = vshrl.u32 %v340, 7
    %v342 = vsub.s32 0, %v341
    %v343 = vrot.slane %v338, %v342
    %v344 = vlaneseq
    %v345 = vshrl.u32 %v344, 7
    %v346 = vsub.s32 1, %v345
    %v347 = vrot.slane %v338, %v346
    %350 = vmatprep.subr.mxu0 %v307
    %351 = vmatpush1.msra.mxu0 %v306
    %352 = vmatprep.subr.mxu0 %v309
    %353 = vmatpush1.msra.mxu0 %v308
    %354 = vmatprep.subr.mxu0 %v311
    %355 = vmatpush1.msra.mxu0 %v310
    %356 = vmatprep.subr.mxu0 %v313
    %357 = vmatpush1.msra.mxu0 %v312
    %358 = vmatprep.subr.mxu0 %v315
    %359 = vmatpush1.msra.mxu0 %v314
    %360 = vmatprep.subr.mxu0 %v317
    %361 = vmatpush1.msra.mxu0 %v316
    %362 = vmatprep.subr.mxu0 %v319
    %363 = vmatpush1.msra.mxu0 %v318
    %364 = vmatprep.subr.mxu0 %v321
    %365 = vmatpush1.msra.mxu0 %v320
    %366 = vmatprep.subr.mxu0 %v323
    %367 = vmatpush1.msra.mxu0 %v322
    %368 = vmatprep.subr.mxu0 %v325
    %369 = vmatpush1.msra.mxu0 %v324
    %370 = vmatprep.subr.mxu0 %v327
    %371 = vmatpush1.msra.mxu0 %v326
    %372 = vmatprep.subr.mxu0 %v329
    %373 = vmatpush1.msra.mxu0 %v328
    %374 = vmatprep.subr.mxu0 %v331
    %375 = vmatpush1.msra.mxu0 %v330
    %376 = vmatprep.subr.mxu0 %v333
    %377 = vmatpush1.msra.mxu0 %v332
    %378 = vmatprep.subr.mxu0 %v335
    %379 = vmatpush1.msra.mxu0 %v334
    %380 = vmatprep.subr.mxu0 %v337
    %381 = vmatpush1.msra.mxu0 %v336
    %382 = vmatprep.subr.mxu0 0.0
    %383 = vmatpush1.msra.mxu0 0.0
    %384 = vmatprep.subr.mxu0 0.0
    %385 = vmatpush1.msra.mxu0 0.0
    %386 = vmatprep.subr.mxu0 0.0
    %387 = vmatpush1.msra.mxu0 0.0
    %388 = vmatprep.subr.mxu0 0.0
    %389 = vmatpush1.msra.mxu0 0.0
    %390 = vmatprep.subr.mxu0 0.0
    %391 = vmatpush1.msra.mxu0 0.0
    %392 = vmatprep.subr.mxu0 0.0
    %393 = vmatpush1.msra.mxu0 0.0
    %394 = vmatprep.subr.mxu0 0.0
    %395 = vmatpush1.msra.mxu0 0.0
    %396 = vmatprep.subr.mxu0 0.0
    %397 = vmatpush1.msra.mxu0 0.0
    %398 = vmatprep.subr.mxu0 0.0
    %399 = vmatpush1.msra.mxu0 0.0
    %400 = vmatprep.subr.mxu0 0.0
    %401 = vmatpush1.msra.mxu0 0.0
    %402 = vmatprep.subr.mxu0 0.0
    %403 = vmatpush1.msra.mxu0 0.0
    %404 = vmatprep.subr.mxu0 0.0
    %405 = vmatpush1.msra.mxu0 0.0
    %406 = vmatprep.subr.mxu0 0.0
    %407 = vmatpush1.msra.mxu0 0.0
    %408 = vmatprep.subr.mxu0 0.0
    %409 = vmatpush1.msra.mxu0 0.0
    %410 = vmatprep.subr.mxu0 0.0
    %411 = vmatpush1.msra.mxu0 0.0
    %412 = vmatprep.subr.mxu0 0.0
    %413 = vmatpush1.msra.mxu0 0.0
    %414 = vmatprep.mubr.f32.mxu0 0.0
    %415 = vmatmul.mubr.f32.gmra.mrb[0].mxu0 %v305
    %v416 = vpop.f32.mrb[0].mxu0
    %v417 = vadd.f32 %v343, %v416
    %v418 = vpop.f32.mrb[0].mxu0
    %v419 = vadd.f32 %v347, %v418
    %420 = vdwg.mxu0
    %vm421 = vcmp.gt.f32.partialorder %v417, 0.0
    %vm422 = vcmp.gt.f32.partialorder %v419, 0.0
    %v423 = vmul.f32 %v417, 0.01
    %v424 = vmul.f32 %v419, 0.01
    %v425 = vsel %vm421, %v417, %v423
    %v426 = vsel %vm422, %v419, %v424
    %v427 = vld [vmem:[#allocation8] sm:$0xff]
    %v428 = vld [vmem:[#allocation8 + $0x8] sm:$0xff]
    %v429 = vld [vmem:[#allocation8 + $0x10] sm:$0xff]
    %v430 = vld [vmem:[#allocation8 + $0x18] sm:$0xff]
    %v431 = vld [vmem:[#allocation8 + $0x20] sm:$0xff]
    %v432 = vld [vmem:[#allocation8 + $0x28] sm:$0xff]
    %v433 = vld [vmem:[#allocation8 + $0x30] sm:$0xff]
    %v434 = vld [vmem:[#allocation8 + $0x38] sm:$0xff]
    %v435 = vld [vmem:[#allocation8 + $0x40] sm:$0xff]
    %v436 = vld [vmem:[#allocation8 + $0x48] sm:$0xff]
    %v437 = vld [vmem:[#allocation8 + $0x50] sm:$0xff]
    %v438 = vld [vmem:[#allocation8 + $0x58] sm:$0xff]
    %v439 = vld [vmem:[#allocation8 + $0x60] sm:$0xff]
    %v440 = vld [vmem:[#allocation8 + $0x68] sm:$0xff]
    %v441 = vld [vmem:[#allocation8 + $0x70] sm:$0xff]
    %v442 = vld [vmem:[#allocation8 + $0x78] sm:$0xff]
    %v443 = vld [vmem:[#allocation8 + $0x80] sm:$0xff]
    %v444 = vld [vmem:[#allocation8 + $0x88] sm:$0xff]
    %v445 = vld [vmem:[#allocation8 + $0x90] sm:$0xff]
    %v446 = vld [vmem:[#allocation8 + $0x98] sm:$0xff]
    %v447 = vld [vmem:[#allocation8 + $0xa0] sm:$0xff]
    %v448 = vld [vmem:[#allocation8 + $0xa8] sm:$0xff]
    %v449 = vld [vmem:[#allocation8 + $0xb0] sm:$0xff]
    %v450 = vld [vmem:[#allocation8 + $0xb8] sm:$0xff]
    %v451 = vld [vmem:[#allocation8 + $0xc0] sm:$0xff]
    %v452 = vld [vmem:[#allocation8 + $0xc8] sm:$0xff]
    %v453 = vld [vmem:[#allocation8 + $0xd0] sm:$0xff]
    %v454 = vld [vmem:[#allocation8 + $0xd8] sm:$0xff]
    %v455 = vld [vmem:[#allocation8 + $0xe0] sm:$0xff]
    %v456 = vld [vmem:[#allocation8 + $0xe8] sm:$0xff]
    %v457 = vld [vmem:[#allocation8 + $0xf0] sm:$0xff]
    %v458 = vld [vmem:[#allocation8 + $0xf8] sm:$0xff]
    %v459 = vld [vmem:[#allocation8 + $0x100] sm:$0xff]
    %v460 = vld [vmem:[#allocation8 + $0x108] sm:$0xff]
    %v461 = vld [vmem:[#allocation8 + $0x110] sm:$0xff]
    %v462 = vld [vmem:[#allocation8 + $0x118] sm:$0xff]
    %v463 = vld [vmem:[#allocation8 + $0x120] sm:$0xff]
    %v464 = vld [vmem:[#allocation8 + $0x128] sm:$0xff]
    %v465 = vld [vmem:[#allocation8 + $0x130] sm:$0xff]
    %v466 = vld [vmem:[#allocation8 + $0x138] sm:$0xff]
    %v467 = vld [vmem:[#allocation8 + $0x140] sm:$0xff]
    %v468 = vld [vmem:[#allocation8 + $0x148] sm:$0xff]
    %v469 = vld [vmem:[#allocation8 + $0x150] sm:$0xff]
    %v470 = vld [vmem:[#allocation8 + $0x158] sm:$0xff]
    %v471 = vld [vmem:[#allocation8 + $0x160] sm:$0xff]
    %v472 = vld [vmem:[#allocation8 + $0x168] sm:$0xff]
    %v473 = vld [vmem:[#allocation8 + $0x170] sm:$0xff]
    %v474 = vld [vmem:[#allocation8 + $0x178] sm:$0xff]
    %v475 = vld [vmem:[#allocation8 + $0x180] sm:$0xff]
    %v476 = vld [vmem:[#allocation8 + $0x188] sm:$0xff]
    %v477 = vld [vmem:[#allocation8 + $0x190] sm:$0xff]
    %v478 = vld [vmem:[#allocation8 + $0x198] sm:$0xff]
    %v479 = vld [vmem:[#allocation8 + $0x1a0] sm:$0xff]
    %v480 = vld [vmem:[#allocation8 + $0x1a8] sm:$0xff]
    %v481 = vld [vmem:[#allocation8 + $0x1b0] sm:$0xff]
    %v482 = vld [vmem:[#allocation8 + $0x1b8] sm:$0xff]
    %v483 = vld [vmem:[#allocation8 + $0x1c0] sm:$0xff]
    %v484 = vld [vmem:[#allocation8 + $0x1c8] sm:$0xff]
    %v485 = vld [vmem:[#allocation8 + $0x1d0] sm:$0xff]
    %v486 = vld [vmem:[#allocation8 + $0x1d8] sm:$0xff]
    %v487 = vld [vmem:[#allocation8 + $0x1e0] sm:$0xff]
    %v488 = vld [vmem:[#allocation8 + $0x1e8] sm:$0xff]
    %v489 = vld [vmem:[#allocation8 + $0x1f0] sm:$0xff]
    %v490 = vld [vmem:[#allocation8 + $0x1f8] sm:$0xff]
    %v491 = vld [vmem:[%s10] sm:$0x3]
    %v493 = vlaneseq
    %v494 = vshrl.u32 %v493, 7
    %v495 = vsub.s32 0, %v494
    %v496 = vrot.slane %v491, %v495
    %v497 = vlaneseq
    %v498 = vshrl.u32 %v497, 7
    %v499 = vsub.s32 1, %v498
    %v500 = vrot.slane %v491, %v499
    %503 = vmatprep.subr.mxu0 %v428
    %504 = vmatpush1.msra.mxu0 %v427
    %505 = vmatprep.subr.mxu0 %v430
    %506 = vmatpush1.msra.mxu0 %v429
    %507 = vmatprep.subr.mxu0 %v432
    %508 = vmatpush1.msra.mxu0 %v431
    %509 = vmatprep.subr.mxu0 %v434
    %510 = vmatpush1.msra.mxu0 %v433
    %511 = vmatprep.subr.mxu0 %v436
    %512 = vmatpush1.msra.mxu0 %v435
    %513 = vmatprep.subr.mxu0 %v438
    %514 = vmatpush1.msra.mxu0 %v437
    %515 = vmatprep.subr.mxu0 %v440
    %516 = vmatpush1.msra.mxu0 %v439
    %517 = vmatprep.subr.mxu0 %v442
    %518 = vmatpush1.msra.mxu0 %v441
    %519 = vmatprep.subr.mxu0 %v444
    %520 = vmatpush1.msra.mxu0 %v443
    %521 = vmatprep.subr.mxu0 %v446
    %522 = vmatpush1.msra.mxu0 %v445
    %523 = vmatprep.subr.mxu0 %v448
    %524 = vmatpush1.msra.mxu0 %v447
    %525 = vmatprep.subr.mxu0 %v450
    %526 = vmatpush1.msra.mxu0 %v449
    %527 = vmatprep.subr.mxu0 %v452
    %528 = vmatpush1.msra.mxu0 %v451
    %529 = vmatprep.subr.mxu0 %v454
    %530 = vmatpush1.msra.mxu0 %v453
    %531 = vmatprep.subr.mxu0 %v456
    %532 = vmatpush1.msra.mxu0 %v455
    %533 = vmatprep.subr.mxu0 %v458
    %534 = vmatpush1.msra.mxu0 %v457
    %535 = vmatprep.subr.mxu0 %v460
    %536 = vmatpush1.msra.mxu0 %v459
    %537 = vmatprep.subr.mxu0 %v462
    %538 = vmatpush1.msra.mxu0 %v461
    %539 = vmatprep.subr.mxu0 %v464
    %540 = vmatpush1.msra.mxu0 %v463
    %541 = vmatprep.subr.mxu0 %v466
    %542 = vmatpush1.msra.mxu0 %v465
    %543 = vmatprep.subr.mxu0 %v468
    %544 = vmatpush1.msra.mxu0 %v467
    %545 = vmatprep.subr.mxu0 %v470
    %546 = vmatpush1.msra.mxu0 %v469
    %547 = vmatprep.subr.mxu0 %v472
    %548 = vmatpush1.msra.mxu0 %v471
    %549 = vmatprep.subr.mxu0 %v474
    %550 = vmatpush1.msra.mxu0 %v473
    %551 = vmatprep.subr.mxu0 %v476
    %552 = vmatpush1.msra.mxu0 %v475
    %553 = vmatprep.subr.mxu0 %v478
    %554 = vmatpush1.msra.mxu0 %v477
    %555 = vmatprep.subr.mxu0 %v480
    %556 = vmatpush1.msra.mxu0 %v479
    %557 = vmatprep.subr.mxu0 %v482
    %558 = vmatpush1.msra.mxu0 %v481
    %559 = vmatprep.subr.mxu0 %v484
    %560 = vmatpush1.msra.mxu0 %v483
    %561 = vmatprep.subr.mxu0 %v486
    %562 = vmatpush1.msra.mxu0 %v485
    %563 = vmatprep.subr.mxu0 %v488
    %564 = vmatpush1.msra.mxu0 %v487
    %565 = vmatprep.subr.mxu0 %v490
    %566 = vmatpush1.msra.mxu0 %v489
    %567 = vmatprep.mubr.f32.mxu0 %v426
    %568 = vmatmul.mubr.f32.gmra.mrb[0].mxu0 %v425
    %v569 = vpop.f32.mrb[0].mxu0
    %v570 = vadd.f32 %v496, %v569
    %v571 = vpop.f32.mrb[0].mxu0
    %v572 = vadd.f32 %v500, %v571
    %573 = vdwg.mxu0
    %v574 = vmax.f32 %v570, 0.0
    %v575 = vmax.f32 %v572, 0.0
    %v576 = vld [vmem:[%s11] sm:$0x3]
    %v578 = vlaneseq
    %v579 = vshrl.u32 %v578, 7
    %v580 = vsub.s32 0, %v579
    %v581 = vrot.slane %v576, %v580
    %v582 = vlaneseq
    %v583 = vshrl.u32 %v582, 7
    %v584 = vsub.s32 1, %v583
    %v585 = vrot.slane %v576, %v584
    %v588 = vmul.f32 %v574, %v581
    %v589 = vmul.f32 %v575, %v585
    %v590 = vadd.f32 %v588, %v589
    %591 = vadd.xlane.f32.xlu0 %v590
    %v592 = vpop.xlane.xlu0 %591
    %v593 = vld [vmem:[#allocation2] sm:$0x1]
    %v595 = vlaneseq
    %v596 = vshrl.u32 %v595, 7
    %v597 = vsub.s32 0, %v596
    %v598 = vrot.slane %v593, %v597
    %v600 = vadd.f32 %v592, %v598
    %vm601 = vcmask 7168
    %602 = vst.msk [vmem:[%s13] sm:$0xff] %vm601, %v600
    // Predicated region
    $region70: #{discriminator_forward.1} parent=1 // pred_check
      _
    $region71: #{discriminator_forward.1} parent=1 // pred_check_branch
      %604 = sbr.rel (0) target = $region73
    $region72: #{discriminator_forward.1} parent=1 // pred_region
      _
    $region73: #{discriminator_forward.1} parent=1 // pred_fallthru
      _
    // Predicated region
    $region74: #{discriminator_forward.1} parent=1 // pred_check
      _
    $region75: #{discriminator_forward.1} parent=1 // pred_check_branch
      %606 = sbr.rel (0) target = $region77
    $region76: #{discriminator_forward.1} parent=1 // pred_region
      _
    $region77: #{discriminator_forward.1} parent=1 // pred_fallthru
      _
    %607 = vsyncpa [#allocation4], 1
    %608 = vsyncpa [#allocation6], 1
    %609 = vsyncpa [#allocation9], 1

</llo_original>
